<compile_context>
chip_gen: v7x
topology: tpu7x:2x2x1
jax: 0.10.0
libtpu: 0.0.40
codegen_flags: <defaults>
</compile_context>

<pallas_src>
import functools

import jax
import jax.numpy as jnp
from jax import lax
from jax.experimental import pallas as pl
from jax.experimental.pallas import tpu as pltpu


def _round_up(x: int, m: int) -> int:
    return (x + m - 1) // m * m


def _cdiv(a: int, b: int) -> int:
    return -(-a // b)


def _elu(z, alpha):
    """ELU(alpha) in f32.  exp(min(z,0)) is a single EUP op, avoids a divide and
    never produces an inf intermediate for large positive z."""
    return jnp.where(z > 0.0, z, alpha * (jnp.exp(jnp.minimum(z, 0.0)) - 1.0))


def _fused_mlp_kernel(x_ref, w0_ref, w_rest_ref, b_ref, o_ref, *, alpha, num_rest):
    """One grid step = one row tile; all L layers run here against VMEM-resident
    weights (constant index_maps => weights are DMA'd from HBM once per call)."""
    # ---- layer 0: contraction only over the real (128-aligned) input features.
    z = jnp.dot(x_ref[...], w0_ref[...], preferred_element_type=jnp.float32)
    z = z + b_ref[0]                                   # f32 bias
    h = _elu(z, alpha).astype(o_ref.dtype)             # store activation in mxu dtype

    # ---- layers 1..L-1 over the resident [L-1, N, N] weight stack.
    if num_rest > 0:
        def body(l, h):
            zl = jnp.dot(h, w_rest_ref[l], preferred_element_type=jnp.float32)
            zl = zl + b_ref[l + 1]
            return _elu(zl, alpha).astype(o_ref.dtype)

        h = lax.fori_loop(0, num_rest, body, h, unroll=(num_rest <= 8))

    o_ref[...] = h
    # Dropout(dropout_rate): identity in eval/inference mode.
    # TODO(synk): training-mode dropout (pltpu.prng_seed + pltpu.prng_random_bits
    # mask + 1/(1-p) rescale) not implemented.


def _vmem_budget_bytes() -> int:
    """Generation-aware scoped-VMEM budget: ~3/4 of physical per-core VMEM, capped
    at 96 MiB (v5e/v6e: 128 MiB physical; v7x: 64 MiB physical)."""
    try:
        cap = int(pltpu.get_tpu_info().vmem_capacity_bytes)
    except Exception:
        cap = 64 * 1024 * 1024
    return max(16 * 1024 * 1024, min((cap * 3) // 4, 96 * 1024 * 1024))


def _plan_tiles(m_rows, k0, n_feat, num_layers, w_itemsize, act_itemsize):
    """Pick (tm, num_row_tiles, vmem_limit) so resident weights + double-buffered
    activation tiles fit the generation-aware VMEM budget."""
    budget = _vmem_budget_bytes()
    # Resident weights / biases.  Count 2x: Pallas statically allocates double
    # buffers per input BlockSpec even when the block index never changes.
    w_bytes = 2 * (k0 * n_feat + max(num_layers - 1, 1) * n_feat * n_feat) * w_itemsize
    b_bytes = 2 * num_layers * 8 * n_feat * 4
    fixed = w_bytes + b_bytes
    per_row = 2 * (k0 + n_feat) * act_itemsize          # x + out tiles, double-buffered
    margin = 2 * 1024 * 1024
    if fixed + 16 * per_row + margin > budget:
        # TODO(synk): fall back to per-layer weight streaming / intra-layer K-N tiling
        # when the resident weight stack does not fit VMEM.
        raise ValueError(
            f"Resident weight stack ({fixed / 2**20:.1f} MiB incl. double buffers) does "
            f"not fit the VMEM budget ({budget / 2**20:.1f} MiB); reduce layers or "
            f"representation_size.")
    tm_cap = (budget - fixed - margin) // per_row
    tm_cap = min(1024, max(16, (tm_cap // 16) * 16))

    num_tiles = _cdiv(m_rows, tm_cap)
    if num_tiles == 1 and m_rows >= 32:
        num_tiles = 2          # give v7x's second TensorCore a row tile when possible
    tm = max(16, _round_up(_cdiv(m_rows, num_tiles), 16))
    num_tiles = _cdiv(m_rows, tm)
    return tm, num_tiles, budget


def fused_mlp(x_pad, w0, w_rest, b_stack, *, alpha, tm, num_rest, vmem_limit_bytes):
    """Run the whole L-layer MLP in a single pallas_call with resident weights.

    x_pad:   [M_pad, K0]        mxu_dtype   (M_pad % tm == 0, K0 % 128 == 0)
    w0:      [K0, N]            mxu_dtype   (layer-0 weight, real K only)
    w_rest:  [max(L-1,1), N, N] mxu_dtype   (dummy, unread, when L == 1)
    b_stack: [L, 1, N]          f32
    """
    m_pad, k0 = x_pad.shape
    n_feat = w0.shape[1]
    assert m_pad % tm == 0 and tm % 16 == 0
    assert k0 % 128 == 0 and n_feat % 128 == 0

    return pl.pallas_call(
        functools.partial(_fused_mlp_kernel, alpha=alpha, num_rest=num_rest),
        out_shape=jax.ShapeDtypeStruct((m_pad, n_feat), x_pad.dtype),
        grid_spec=pltpu.PrefetchScalarGridSpec(
            num_scalar_prefetch=0,
            grid=(m_pad // tm,),                                   # row tiles only
            in_specs=[
                pl.BlockSpec((tm, k0), lambda i: (i, 0)),          # x tile per step
                pl.BlockSpec(w0.shape, lambda i: (0, 0)),          # resident
                pl.BlockSpec(w_rest.shape, lambda i: (0, 0, 0)),   # resident
                pl.BlockSpec(b_stack.shape, lambda i: (0, 0, 0)),  # resident
            ],
            out_specs=pl.BlockSpec((tm, n_feat), lambda i: (i, 0)),
        ),
        compiler_params=pltpu.CompilerParams(
            dimension_semantics=("parallel",),
            vmem_limit_bytes=int(vmem_limit_bytes),
        ),
    )(x_pad, w0, w_rest, b_stack)


class SimpleSequentialModelPallas:
    """JAX/Pallas port of SimpleSequentialModel (eval mode).

    layers x [Linear(representation_size), ELU(alpha), Dropout(dropout_rate)].
    The lazy first Linear is materialized from `in_features`.  Dropout is identity.
    Output is returned in mxu_dtype (bf16 by default; pass jnp.float32 for exact f32).
    """

    def __init__(self, layers, in_features, representation_size=1024, alpha=0.1,
                 dropout_rate=0.2, key=None, mxu_dtype=jnp.bfloat16):
        if layers < 1:
            raise Exception("Layers number should be an int greater or equal 1")
        self.layers = layers
        self.in_features = in_features
        self.representation_size = representation_size
        self.alpha = float(alpha)
        self.dropout_rate = dropout_rate        # identity in eval mode
        self.mxu_dtype = mxu_dtype

        key = key if key is not None else jax.random.PRNGKey(0)
        self.params = []                        # f32 master weights, [in, out] layout
        fan_in = in_features
        for _ in range(layers):
            key, wk, bk = jax.random.split(key, 3)
            bound = 1.0 / float(fan_in) ** 0.5  # PyTorch Linear default init
            w = jax.random.uniform(wk, (fan_in, representation_size), jnp.float32,
                                   -bound, bound)
            b = jax.random.uniform(bk, (representation_size,), jnp.float32,
                                   -bound, bound)
            self.params.append((w, b))
            fan_in = representation_size

        # Lane-aligned packing.  Zero padding is inert: padded input features are 0,
        # padded weight rows/cols and biases are 0, and ELU(0) == 0, so padded
        # features stay 0 through every layer.
        self.k0_pad = _round_up(in_features, 128)
        self.n_pad = _round_up(representation_size, 128)
        rep = representation_size

        w0 = jnp.zeros((self.k0_pad, self.n_pad), jnp.float32)
        w0 = w0.at[:in_features, :rep].set(self.params[0][0])
        if layers > 1:
            w_rest = jnp.zeros((layers - 1, self.n_pad, self.n_pad), jnp.float32)
            for l in range(1, layers):
                w_rest = w_rest.at[l - 1, :rep, :rep].set(self.params[l][0])
        else:
            # Tiny dummy block; never read (fori_loop trip count 0).
            w_rest = jnp.zeros((1, 16, 128), jnp.float32)
        b_stack = jnp.zeros((layers, 1, self.n_pad), jnp.float32)
        for l, (_, b) in enumerate(self.params):
            b_stack = b_stack.at[l, 0, :rep].set(b)

        self.w0 = w0.astype(mxu_dtype)          # bf16: MXU-native, half the HBM bytes
        self.w_rest = w_rest.astype(mxu_dtype)
        self.b_stack = b_stack                  # biases stay f32 (epilogue precision)

    def __call__(self, x):
        m_rows, k_in = x.shape
        assert k_in == self.in_features, (k_in, self.in_features)
        itemsize = jnp.dtype(self.mxu_dtype).itemsize
        tm, num_tiles, vmem_limit = _plan_tiles(
            m_rows, self.k0_pad, self.n_pad, self.layers, itemsize, itemsize)
        m_pad = tm * num_tiles
        x_pad = jnp.pad(x.astype(self.mxu_dtype),
                        ((0, m_pad - m_rows), (0, self.k0_pad - k_in)))
        out_pad = fused_mlp(x_pad, self.w0, self.w_rest, self.b_stack,
                            alpha=self.alpha, tm=tm, num_rest=self.layers - 1,
                            vmem_limit_bytes=vmem_limit)
        return out_pad[:m_rows, :self.representation_size]


def _reference_forward(x, params, alpha, mxu_dtype):
    """Plain-JAX reference matching the kernel's dtype handling (mxu_dtype matmul
    inputs + stored activations, f32 accumulation / bias / ELU)."""
    h = x.astype(mxu_dtype)
    for w, b in params:
        z = jnp.dot(h, w.astype(mxu_dtype), preferred_element_type=jnp.float32) + b
        h = jnp.where(z > 0.0, z, alpha * jnp.expm1(z)).astype(mxu_dtype)
    return h


if __name__ == "__main__":
    key = jax.random.PRNGKey(0)
    kx, kp = jax.random.split(key)
    batch, in_features, rep, n_layers = 8, 64, 128, 3
    alpha = 0.1

    x = jax.random.normal(kx, (batch, in_features), jnp.float32)

    # 1) f32 MXU path: tight structural check of the fused kernel.
    model_f32 = SimpleSequentialModelPallas(
        layers=n_layers, in_features=in_features, representation_size=rep,
        alpha=alpha, dropout_rate=0.2, key=kp, mxu_dtype=jnp.float32)
    out_f32 = jax.block_until_ready(model_f32(x))
    ref_f32 = _reference_forward(x, model_f32.params, alpha, jnp.float32)
    assert out_f32.shape == (batch, rep), out_f32.shape
    assert jnp.allclose(out_f32, ref_f32, atol=2e-4, rtol=2e-4), float(
        jnp.max(jnp.abs(out_f32 - ref_f32)))

    # 2) bf16 MXU path (recommended on v6e/v7x): same params, bf16 tolerance.
    model = SimpleSequentialModelPallas(
        layers=n_layers, in_features=in_features, representation_size=rep,
        alpha=alpha, dropout_rate=0.2, key=kp)          # mxu_dtype=bf16 default
    out = jax.block_until_ready(model(x))
    ref = _reference_forward(x, model.params, alpha, jnp.bfloat16)
    assert out.shape == (batch, rep), out.shape
    out_f = out.astype(jnp.float32)
    ref_f = ref.astype(jnp.float32)
    assert bool(jnp.all(jnp.isfinite(out_f)))
    assert jnp.allclose(out_f, ref_f, atol=2e-2, rtol=2e-2), float(
        jnp.max(jnp.abs(out_f - ref_f)))

    print("KERNEL_OK")
</pallas_src>

<mosaic_0001>
module attributes {stable_mosaic.version = 11 : i64} {
  func.func @_fused_mlp_kernel(%arg0: i32, %arg1: memref<16x128xf32, #tpu.memory_space<vmem>>, %arg2: memref<128x128xf32, #tpu.memory_space<vmem>>, %arg3: memref<2x128x128xf32, #tpu.memory_space<vmem>>, %arg4: memref<3x1x128xf32, #tpu.memory_space<vmem>>, %arg5: memref<16x128xf32, #tpu.memory_space<vmem>>) attributes {dimension_semantics = [#tpu.dimension_semantics<parallel>], iteration_bounds = array<i64: 1>, scalar_prefetch = 0 : i64, scratch_operands = 0 : i64, tpu.core_type = #tpu.core_type<tc>, window_params = [{transform_indices = @transform_0, window_bounds = array<i64: 16, 128>}, {pipeline_mode = #tpu.pipeline_mode<synchronous>, transform_indices = @transform_1, window_bounds = array<i64: 128, 128>}, {pipeline_mode = #tpu.pipeline_mode<synchronous>, transform_indices = @transform_2, window_bounds = array<i64: 2, 128, 128>}, {pipeline_mode = #tpu.pipeline_mode<synchronous>, transform_indices = @transform_3, window_bounds = array<i64: 3, 1, 128>}, {transform_indices = @transform_4, window_bounds = array<i64: 16, 128>}]} {
    %c0 = arith.constant 0 : index
    %c0_0 = arith.constant 0 : index
    %0 = vector.load %arg1[%c0, %c0_0] : memref<16x128xf32, #tpu.memory_space<vmem>>, vector<16x128xf32>
    %c0_1 = arith.constant 0 : index
    %c0_2 = arith.constant 0 : index
    %1 = vector.load %arg2[%c0_1, %c0_2] : memref<128x128xf32, #tpu.memory_space<vmem>>, vector<128x128xf32>
    %cst = arith.constant dense<0.000000e+00> : vector<16x128xf32>
    %2 = tpu.matmul %0, %1, %cst {dimension_numbers = #tpu.dot_dimension_numbers<[1], [0], [0], [1], [0, 0, 1, 1], [], []>} : vector<16x128xf32>, vector<128x128xf32>, vector<16x128xf32> -> vector<16x128xf32>
    %c0_3 = arith.constant 0 : index
    %c0_4 = arith.constant 0 : index
    %c0_5 = arith.constant 0 : index
    %3 = vector.load %arg4[%c0_3, %c0_4, %c0_5] : memref<3x1x128xf32, #tpu.memory_space<vmem>>, vector<1x1x128xf32>
    %4 = vector.shape_cast %3 : vector<1x1x128xf32> to vector<1x128xf32>
    %5 = vector.broadcast %4 : vector<1x128xf32> to vector<16x128xf32>
    %6 = arith.addf %2, %5 : vector<16x128xf32>
    %cst_6 = arith.constant 0.000000e+00 : f32
    %7 = vector.broadcast %cst_6 : f32 to vector<16x128xf32>
    %8 = arith.cmpf ogt, %6, %7 : vector<16x128xf32>
    %cst_7 = arith.constant 0.000000e+00 : f32
    %9 = vector.broadcast %cst_7 : f32 to vector<16x128xf32>
    %10 = arith.minimumf %6, %9 : vector<16x128xf32>
    %11 = math.exp %10 : vector<16x128xf32>
    %cst_8 = arith.constant 1.000000e+00 : f32
    %12 = vector.broadcast %cst_8 : f32 to vector<16x128xf32>
    %13 = arith.subf %11, %12 : vector<16x128xf32>
    %cst_9 = arith.constant 1.000000e-01 : f32
    %14 = vector.broadcast %cst_9 : f32 to vector<16x128xf32>
    %15 = arith.mulf %14, %13 : vector<16x128xf32>
    %16 = arith.select %8, %6, %15 : vector<16x128xi1>, vector<16x128xf32>
    %c0_i32 = arith.constant 0 : i32
    %17 = arith.index_cast %c0_i32 : i32 to index
    %c0_10 = arith.constant 0 : index
    %c0_11 = arith.constant 0 : index
    %18 = vector.load %arg3[%17, %c0_10, %c0_11] : memref<2x128x128xf32, #tpu.memory_space<vmem>>, vector<1x128x128xf32>
    %19 = vector.shape_cast %18 : vector<1x128x128xf32> to vector<128x128xf32>
    %cst_12 = arith.constant dense<0.000000e+00> : vector<16x128xf32>
    %20 = tpu.matmul %16, %19, %cst_12 {dimension_numbers = #tpu.dot_dimension_numbers<[1], [0], [0], [1], [0, 0, 1, 1], [], []>} : vector<16x128xf32>, vector<128x128xf32>, vector<16x128xf32> -> vector<16x128xf32>
    %c1_i32 = arith.constant 1 : i32
    %21 = arith.addi %c0_i32, %c1_i32 : i32
    %22 = arith.index_cast %21 : i32 to index
    %c0_13 = arith.constant 0 : index
    %c0_14 = arith.constant 0 : index
    %23 = vector.load %arg4[%22, %c0_13, %c0_14] : memref<3x1x128xf32, #tpu.memory_space<vmem>>, vector<1x1x128xf32>
    %24 = vector.shape_cast %23 : vector<1x1x128xf32> to vector<1x128xf32>
    %25 = vector.broadcast %24 : vector<1x128xf32> to vector<16x128xf32>
    %26 = arith.addf %20, %25 : vector<16x128xf32>
    %cst_15 = arith.constant 0.000000e+00 : f32
    %27 = vector.broadcast %cst_15 : f32 to vector<16x128xf32>
    %28 = arith.cmpf ogt, %26, %27 : vector<16x128xf32>
    %cst_16 = arith.constant 0.000000e+00 : f32
    %29 = vector.broadcast %cst_16 : f32 to vector<16x128xf32>
    %30 = arith.minimumf %26, %29 : vector<16x128xf32>
    %31 = math.exp %30 : vector<16x128xf32>
    %cst_17 = arith.constant 1.000000e+00 : f32
    %32 = vector.broadcast %cst_17 : f32 to vector<16x128xf32>
    %33 = arith.subf %31, %32 : vector<16x128xf32>
    %cst_18 = arith.constant 1.000000e-01 : f32
    %34 = vector.broadcast %cst_18 : f32 to vector<16x128xf32>
    %35 = arith.mulf %34, %33 : vector<16x128xf32>
    %36 = arith.select %28, %26, %35 : vector<16x128xi1>, vector<16x128xf32>
    %c1_i32_19 = arith.constant 1 : i32
    %37 = arith.index_cast %c1_i32_19 : i32 to index
    %c0_20 = arith.constant 0 : index
    %c0_21 = arith.constant 0 : index
    %38 = vector.load %arg3[%37, %c0_20, %c0_21] : memref<2x128x128xf32, #tpu.memory_space<vmem>>, vector<1x128x128xf32>
    %39 = vector.shape_cast %38 : vector<1x128x128xf32> to vector<128x128xf32>
    %cst_22 = arith.constant dense<0.000000e+00> : vector<16x128xf32>
    %40 = tpu.matmul %36, %39, %cst_22 {dimension_numbers = #tpu.dot_dimension_numbers<[1], [0], [0], [1], [0, 0, 1, 1], [], []>} : vector<16x128xf32>, vector<128x128xf32>, vector<16x128xf32> -> vector<16x128xf32>
    %c1_i32_23 = arith.constant 1 : i32
    %41 = arith.addi %c1_i32_19, %c1_i32_23 : i32
    %42 = arith.index_cast %41 : i32 to index
    %c0_24 = arith.constant 0 : index
    %c0_25 = arith.constant 0 : index
    %43 = vector.load %arg4[%42, %c0_24, %c0_25] : memref<3x1x128xf32, #tpu.memory_space<vmem>>, vector<1x1x128xf32>
    %44 = vector.shape_cast %43 : vector<1x1x128xf32> to vector<1x128xf32>
    %45 = vector.broadcast %44 : vector<1x128xf32> to vector<16x128xf32>
    %46 = arith.addf %40, %45 : vector<16x128xf32>
    %cst_26 = arith.constant 0.000000e+00 : f32
    %47 = vector.broadcast %cst_26 : f32 to vector<16x128xf32>
    %48 = arith.cmpf ogt, %46, %47 : vector<16x128xf32>
    %cst_27 = arith.constant 0.000000e+00 : f32
    %49 = vector.broadcast %cst_27 : f32 to vector<16x128xf32>
    %50 = arith.minimumf %46, %49 : vector<16x128xf32>
    %51 = math.exp %50 : vector<16x128xf32>
    %cst_28 = arith.constant 1.000000e+00 : f32
    %52 = vector.broadcast %cst_28 : f32 to vector<16x128xf32>
    %53 = arith.subf %51, %52 : vector<16x128xf32>
    %cst_29 = arith.constant 1.000000e-01 : f32
    %54 = vector.broadcast %cst_29 : f32 to vector<16x128xf32>
    %55 = arith.mulf %54, %53 : vector<16x128xf32>
    %56 = arith.select %48, %46, %55 : vector<16x128xi1>, vector<16x128xf32>
    %c2_i32 = arith.constant 2 : i32
    %c0_30 = arith.constant 0 : index
    %c0_31 = arith.constant 0 : index
    %57 = vector.load %arg5[%c0_30, %c0_31] : memref<16x128xf32, #tpu.memory_space<vmem>>, vector<16x128xf32>
    tpu.vector_store %arg5[%c0_30, %c0_31], %56 {strides = array<i32>} : memref<16x128xf32, #tpu.memory_space<vmem>>, vector<16x128xf32>,
    return
  }
  func.func @transform_0(%arg0: i32) -> (i32, i32) {
    %c0_i32 = arith.constant 0 : i32
    %c0_i32_0 = arith.constant 0 : i32
    return %arg0, %c0_i32 : i32, i32
  }
  func.func @transform_1(%arg0: i32) -> (i32, i32) {
    %c0_i32 = arith.constant 0 : i32
    %c0_i32_0 = arith.constant 0 : i32
    %c0_i32_1 = arith.constant 0 : i32
    return %c0_i32, %c0_i32_0 : i32, i32
  }
  func.func @transform_2(%arg0: i32) -> (i32, i32, i32) {
    %c0_i32 = arith.constant 0 : i32
    %c0_i32_0 = arith.constant 0 : i32
    %c0_i32_1 = arith.constant 0 : i32
    %c0_i32_2 = arith.constant 0 : i32
    return %c0_i32, %c0_i32_0, %c0_i32_1 : i32, i32, i32
  }
  func.func @transform_3(%arg0: i32) -> (i32, i32, i32) {
    %c0_i32 = arith.constant 0 : i32
    %c0_i32_0 = arith.constant 0 : i32
    %c0_i32_1 = arith.constant 0 : i32
    %c0_i32_2 = arith.constant 0 : i32
    return %c0_i32, %c0_i32_0, %c0_i32_1 : i32, i32, i32
  }
  func.func @transform_4(%arg0: i32) -> (i32, i32) {
    %c0_i32 = arith.constant 0 : i32
    %c0_i32_0 = arith.constant 0 : i32
    return %arg0, %c0_i32 : i32, i32
  }
}

</mosaic_0001>

<llo_original>
// kernel: tpu_custom_call.1
$region0: #{tpu_custom_call.1}
  #allocation0 [shape = 'u32[]', space=smem, size = 0x4, offset = 0x4, fixed_abs, tag = 'smem constant byte address 0x4 - core index']
  #allocation1 [shape = 'u32[144,128]{1,0:T(1,128)}', space=vmem, size = 0x12000, scoped, tag = 'internal scratch']
  %s0 = inlined_call_operand.hbm [shape: f32[16,128], index: 0, kind: input, shape index: {}]
  %s1 = inlined_call_operand.hbm [shape: f32[128,128], index: 1, kind: input, shape index: {}]
  %s2 = inlined_call_operand.hbm [shape: f32[2,128,128], index: 2, kind: input, shape index: {}]
  %s3 = inlined_call_operand.vmem [shape: f32[3,1,128], index: 3, kind: input, shape index: {}]
  %s4 = inlined_call_operand.hbm [shape: f32[16,128], index: 4, kind: output, shape index: {}]
  %s5 = sld [smem:[#allocation0]]
  $region38: #{tpu_custom_call.1} parent=0
    _
  %s7 = ssub.s32 1, %s5
  %s8 = scalar_select 0, %s7, %s5
  $region1: #{tpu_custom_call.1} parent=0
    #allocation2 [shape = 'u8[8192]{0}', space=vmem, size = 0x2000, scoped, tag = 'input window, operand 0, single buffered']
    #allocation3 [shape = 's32[1]{0}', space=sflag, size = 0x4, scoped, tag = 'scoped memory for tpu_custom_call.1']
    #allocation4 [shape = 's32[1]{0}', space=sflag, size = 0x4, scoped, tag = 'scoped memory for tpu_custom_call.1']
    #allocation5 [shape = 'u8[65536]{0}', space=vmem, size = 0x10000, scoped, tag = 'input window, operand 1, single buffered']
    #allocation6 [shape = 's32[1]{0}', space=sflag, size = 0x4, scoped, tag = 'scoped memory for tpu_custom_call.1']
    #allocation7 [shape = 'u8[131072]{0}', space=vmem, size = 0x20000, scoped, tag = 'input window, operand 2, single buffered']
    #allocation8 [shape = 'u8[8192]{0}', space=vmem, size = 0x2000, scoped, tag = 'output window, operand 0, single buffered']
    %9 = vsyncpa [#allocation3], 0
    %10 = vsyncpa [#allocation6], 0
    %11 = vsyncpa [#allocation4], 0
    // Predicated region
    $region2: #{tpu_custom_call.1} parent=1 // pred_check
      _
    $region3: #{tpu_custom_call.1} parent=1 // pred_check_branch
      %13 = sbr.rel (0) target = $region5
    $region4: #{tpu_custom_call.1} parent=1 // pred_region
      %s15 = ssub.s32 256, 256
      %16 = vsyncadd [#allocation3], %s15
      %s17 = sshll.u32 [#allocation2], 4
      %s18 = int_to_ptr.vmem [resolvable:$true] %s17
      %23 = dma.hbm_to_vmem [thread:$0]  %s0, 256, %s18, [#allocation3], 128, 128, 8
    $region5: #{tpu_custom_call.1} parent=1 // pred_fallthru
      _
    // Predicated region
    $region6: #{tpu_custom_call.1} parent=1 // pred_check
      _
    $region7: #{tpu_custom_call.1} parent=1 // pred_check_branch
      %25 = sbr.rel (0) target = $region9
    $region8: #{tpu_custom_call.1} parent=1 // pred_region
      %s27 = ssub.s32 2048, 2048
      %28 = vsyncadd [#allocation6], %s27
      %s29 = sshll.u32 [#allocation5], 4
      %s30 = int_to_ptr.vmem [resolvable:$true] %s29
      %35 = dma.hbm_to_vmem [thread:$0]  %s1, 2048, %s30, [#allocation6], 128, 128, 8
    $region9: #{tpu_custom_call.1} parent=1 // pred_fallthru
      _
    // Predicated region
    $region10: #{tpu_custom_call.1} parent=1 // pred_check
      _
    $region11: #{tpu_custom_call.1} parent=1 // pred_check_branch
      %37 = sbr.rel (0) target = $region13
    $region12: #{tpu_custom_call.1} parent=1 // pred_region
      %s39 = ssub.s32 4096, 4096
      %40 = vsyncadd [#allocation6], %s39
      %s41 = sshll.u32 [#allocation7], 4
      %s42 = int_to_ptr.vmem [resolvable:$true] %s41
      %47 = dma.hbm_to_vmem [thread:$0]  %s2, 4096, %s42, [#allocation6], 128, 128, 8
    $region13: #{tpu_custom_call.1} parent=1 // pred_fallthru
      _
    // Predicated region
    $region14: #{tpu_custom_call.1} parent=1 // pred_check
      _
    $region15: #{tpu_custom_call.1} parent=1 // pred_check_branch
      %49 = sbr.rel (0) target = $region17
    $region16: #{tpu_custom_call.1} parent=1 // pred_region
      _
    $region17: #{tpu_custom_call.1} parent=1 // pred_fallthru
      _
    // Predicated region
    $region18: #{tpu_custom_call.1} parent=1 // pred_check
      _
    $region19: #{tpu_custom_call.1} parent=1 // pred_check_branch
      %51 = sbr.rel (0) target = $region21
    $region20: #{tpu_custom_call.1} parent=1 // pred_region
      %52 = dma.done [#allocation3], 256
    $region21: #{tpu_custom_call.1} parent=1 // pred_fallthru
      _
    // Predicated region
    $region22: #{tpu_custom_call.1} parent=1 // pred_check
      _
    $region23: #{tpu_custom_call.1} parent=1 // pred_check_branch
      %54 = sbr.rel (0) target = $region25
    $region24: #{tpu_custom_call.1} parent=1 // pred_region
      %55 = dma.done [#allocation6], 2048
    $region25: #{tpu_custom_call.1} parent=1 // pred_fallthru
      _
    // Predicated region
    $region26: #{tpu_custom_call.1} parent=1 // pred_check
      _
    $region27: #{tpu_custom_call.1} parent=1 // pred_check_branch
      %57 = sbr.rel (0) target = $region29
    $region28: #{tpu_custom_call.1} parent=1 // pred_region
      %58 = dma.done [#allocation6], 4096
    $region29: #{tpu_custom_call.1} parent=1 // pred_fallthru
      _
    %v59 = vld [vmem:[#allocation2] sm:$0xff]
    %v60 = vld [vmem:[#allocation2 + $0x8] sm:$0xff]
    %v61 = vld [vmem:[#allocation5] sm:$0xff]
    %v62 = vld [vmem:[#allocation5 + $0x8] sm:$0xff]
    %v63 = vld [vmem:[#allocation5 + $0x10] sm:$0xff]
    %v64 = vld [vmem:[#allocation5 + $0x18] sm:$0xff]
    %v65 = vld [vmem:[#allocation5 + $0x20] sm:$0xff]
    %v66 = vld [vmem:[#allocation5 + $0x28] sm:$0xff]
    %v67 = vld [vmem:[#allocation5 + $0x30] sm:$0xff]
    %v68 = vld [vmem:[#allocation5 + $0x38] sm:$0xff]
    %v69 = vld [vmem:[#allocation5 + $0x40] sm:$0xff]
    %v70 = vld [vmem:[#allocation5 + $0x48] sm:$0xff]
    %v71 = vld [vmem:[#allocation5 + $0x50] sm:$0xff]
    %v72 = vld [vmem:[#allocation5 + $0x58] sm:$0xff]
    %v73 = vld [vmem:[#allocation5 + $0x60] sm:$0xff]
    %v74 = vld [vmem:[#allocation5 + $0x68] sm:$0xff]
    %v75 = vld [vmem:[#allocation5 + $0x70] sm:$0xff]
    %v76 = vld [vmem:[#allocation5 + $0x78] sm:$0xff]
    %v77 = vld [vmem:[%s3] sm:$0x1]
    %v79 = vlaneseq
    %v80 = vshrl.u32 %v79, 7
    %v81 = vsub.s32 0, %v80
    %v82 = vrot.slane %v77, %v81
    %84 = vmatprep.subr.mxu0 0.0
    %85 = vmatpush1.msra.mxu0 %v61
    %86 = vmatprep.subr.mxu0 0.0
    %87 = vmatpush1.msra.mxu0 %v62
    %88 = vmatprep.subr.mxu0 0.0
    %89 = vmatpush1.msra.mxu0 %v63
    %90 = vmatprep.subr.mxu0 0.0
    %91 = vmatpush1.msra.mxu0 %v64
    %92 = vmatprep.subr.mxu0 0.0
    %93 = vmatpush1.msra.mxu0 %v65
    %94 = vmatprep.subr.mxu0 0.0
    %95 = vmatpush1.msra.mxu0 %v66
    %96 = vmatprep.subr.mxu0 0.0
    %97 = vmatpush1.msra.mxu0 %v67
    %98 = vmatprep.subr.mxu0 0.0
    %99 = vmatpush1.msra.mxu0 %v68
    %100 = vmatprep.subr.mxu0 0.0
    %101 = vmatpush1.msra.mxu0 %v69
    %102 = vmatprep.subr.mxu0 0.0
    %103 = vmatpush1.msra.mxu0 %v70
    %104 = vmatprep.subr.mxu0 0.0
    %105 = vmatpush1.msra.mxu0 %v71
    %106 = vmatprep.subr.mxu0 0.0
    %107 = vmatpush1.msra.mxu0 %v72
    %108 = vmatprep.subr.mxu0 0.0
    %109 = vmatpush1.msra.mxu0 %v73
    %110 = vmatprep.subr.mxu0 0.0
    %111 = vmatpush1.msra.mxu0 %v74
    %112 = vmatprep.subr.mxu0 0.0
    %113 = vmatpush1.msra.mxu0 %v75
    %114 = vmatprep.subr.mxu0 0.0
    %115 = vmatpush1.msra.mxu0 %v76
    %116 = vmatprep.subr.mxu0 0.0
    %117 = vmatpush1.msra.mxu0 0.0
    %118 = vmatprep.subr.mxu0 0.0
    %119 = vmatpush1.msra.mxu0 0.0
    %120 = vmatprep.subr.mxu0 0.0
    %121 = vmatpush1.msra.mxu0 0.0
    %122 = vmatprep.subr.mxu0 0.0
    %123 = vmatpush1.msra.mxu0 0.0
    %124 = vmatprep.subr.mxu0 0.0
    %125 = vmatpush1.msra.mxu0 0.0
    %126 = vmatprep.subr.mxu0 0.0
    %127 = vmatpush1.msra.mxu0 0.0
    %128 = vmatprep.subr.mxu0 0.0
    %129 = vmatpush1.msra.mxu0 0.0
    %130 = vmatprep.subr.mxu0 0.0
    %131 = vmatpush1.msra.mxu0 0.0
    %132 = vmatprep.subr.mxu0 0.0
    %133 = vmatpush1.msra.mxu0 0.0
    %134 = vmatprep.subr.mxu0 0.0
    %135 = vmatpush1.msra.mxu0 0.0
    %136 = vmatprep.subr.mxu0 0.0
    %137 = vmatpush1.msra.mxu0 0.0
    %138 = vmatprep.subr.mxu0 0.0
    %139 = vmatpush1.msra.mxu0 0.0
    %140 = vmatprep.subr.mxu0 0.0
    %141 = vmatpush1.msra.mxu0 0.0
    %142 = vmatprep.subr.mxu0 0.0
    %143 = vmatpush1.msra.mxu0 0.0
    %144 = vmatprep.subr.mxu0 0.0
    %145 = vmatpush1.msra.mxu0 0.0
    %146 = vmatprep.subr.mxu0 0.0
    %147 = vmatpush1.msra.mxu0 0.0
    %148 = vmatprep.mubr.f32.mxu0 0.0
    %149 = vmatmul.mubr.f32.gmra.mrb[0].mxu0 %v59
    %v150 = vpop.f32.mrb[0].mxu0
    %v151 = vadd.f32 %v82, %v150
    %v152 = vpop.f32.mrb[0].mxu0
    %153 = vmatprep.mubr.f32.mxu0 0.0
    %154 = vmatmul.mubr.f32.gmra.mrb[0].mxu0 %v60
    %v155 = vpop.f32.mrb[0].mxu0
    %v156 = vadd.f32 %v82, %v155
    %v157 = vpop.f32.mrb[0].mxu0
    %158 = vdwg.mxu0
    %vm159 = vcmp.gt.f32.partialorder %v151, 0.0
    %vm160 = vcmp.gt.f32.partialorder %v156, 0.0
    %v161 = vmin.f32 %v151, 0.0
    %v162 = vmin.f32 %v156, 0.0
    %v163 = vmul.f32 %v161, 1.442695
    %v164 = vpow.pop %v163
    %v165 = vmul.f32 %v162, 1.442695
    %v166 = vpow.pop %v165
    %v167 = vsub.f32 %v164, 1.0
    %v168 = vsub.f32 %v166, 1.0
    %v169 = vmul.f32 %v167, 0.1
    %v170 = vmul.f32 %v168, 0.1
    %v171 = vsel %vm159, %v151, %v169
    %v172 = vsel %vm160, %v156, %v170
    %v173 = vld [vmem:[#allocation7] sm:$0xff]
    %v174 = vld [vmem:[#allocation7 + $0x8] sm:$0xff]
    %v175 = vld [vmem:[#allocation7 + $0x10] sm:$0xff]
    %v176 = vld [vmem:[#allocation7 + $0x18] sm:$0xff]
    %v177 = vld [vmem:[#allocation7 + $0x20] sm:$0xff]
    %v178 = vld [vmem:[#allocation7 + $0x28] sm:$0xff]
    %v179 = vld [vmem:[#allocation7 + $0x30] sm:$0xff]
    %v180 = vld [vmem:[#allocation7 + $0x38] sm:$0xff]
    %v181 = vld [vmem:[#allocation7 + $0x40] sm:$0xff]
    %v182 = vld [vmem:[#allocation7 + $0x48] sm:$0xff]
    %v183 = vld [vmem:[#allocation7 + $0x50] sm:$0xff]
    %v184 = vld [vmem:[#allocation7 + $0x58] sm:$0xff]
    %v185 = vld [vmem:[#allocation7 + $0x60] sm:$0xff]
    %v186 = vld [vmem:[#allocation7 + $0x68] sm:$0xff]
    %v187 = vld [vmem:[#allocation7 + $0x70] sm:$0xff]
    %v188 = vld [vmem:[#allocation7 + $0x78] sm:$0xff]
    %s189 = scalar_lea.vmem %s3, 1
    %v190 = vld [vmem:[%s189] sm:$0x1]
    %v192 = vlaneseq
    %v193 = vshrl.u32 %v192, 7
    %v194 = vsub.s32 0, %v193
    %v195 = vrot.slane %v190, %v194
    %197 = vmatprep.subr.mxu0 0.0
    %198 = vmatpush1.msra.mxu0 %v173
    %199 = vmatprep.subr.mxu0 0.0
    %200 = vmatpush1.msra.mxu0 %v174
    %201 = vmatprep.subr.mxu0 0.0
    %202 = vmatpush1.msra.mxu0 %v175
    %203 = vmatprep.subr.mxu0 0.0
    %204 = vmatpush1.msra.mxu0 %v176
    %205 = vmatprep.subr.mxu0 0.0
    %206 = vmatpush1.msra.mxu0 %v177
    %207 = vmatprep.subr.mxu0 0.0
    %208 = vmatpush1.msra.mxu0 %v178
    %209 = vmatprep.subr.mxu0 0.0
    %210 = vmatpush1.msra.mxu0 %v179
    %211 = vmatprep.subr.mxu0 0.0
    %212 = vmatpush1.msra.mxu0 %v180
    %213 = vmatprep.subr.mxu0 0.0
    %214 = vmatpush1.msra.mxu0 %v181
    %215 = vmatprep.subr.mxu0 0.0
    %216 = vmatpush1.msra.mxu0 %v182
    %217 = vmatprep.subr.mxu0 0.0
    %218 = vmatpush1.msra.mxu0 %v183
    %219 = vmatprep.subr.mxu0 0.0
    %220 = vmatpush1.msra.mxu0 %v184
    %221 = vmatprep.subr.mxu0 0.0
    %222 = vmatpush1.msra.mxu0 %v185
    %223 = vmatprep.subr.mxu0 0.0
    %224 = vmatpush1.msra.mxu0 %v186
    %225 = vmatprep.subr.mxu0 0.0
    %226 = vmatpush1.msra.mxu0 %v187
    %227 = vmatprep.subr.mxu0 0.0
    %228 = vmatpush1.msra.mxu0 %v188
    %229 = vmatprep.subr.mxu0 0.0
    %230 = vmatpush1.msra.mxu0 0.0
    %231 = vmatprep.subr.mxu0 0.0
    %232 = vmatpush1.msra.mxu0 0.0
    %233 = vmatprep.subr.mxu0 0.0
    %234 = vmatpush1.msra.mxu0 0.0
    %235 = vmatprep.subr.mxu0 0.0
    %236 = vmatpush1.msra.mxu0 0.0
    %237 = vmatprep.subr.mxu0 0.0
    %238 = vmatpush1.msra.mxu0 0.0
    %239 = vmatprep.subr.mxu0 0.0
    %240 = vmatpush1.msra.mxu0 0.0
    %241 = vmatprep.subr.mxu0 0.0
    %242 = vmatpush1.msra.mxu0 0.0
    %243 = vmatprep.subr.mxu0 0.0
    %244 = vmatpush1.msra.mxu0 0.0
    %245 = vmatprep.subr.mxu0 0.0
    %246 = vmatpush1.msra.mxu0 0.0
    %247 = vmatprep.subr.mxu0 0.0
    %248 = vmatpush1.msra.mxu0 0.0
    %249 = vmatprep.subr.mxu0 0.0
    %250 = vmatpush1.msra.mxu0 0.0
    %251 = vmatprep.subr.mxu0 0.0
    %252 = vmatpush1.msra.mxu0 0.0
    %253 = vmatprep.subr.mxu0 0.0
    %254 = vmatpush1.msra.mxu0 0.0
    %255 = vmatprep.subr.mxu0 0.0
    %256 = vmatpush1.msra.mxu0 0.0
    %257 = vmatprep.subr.mxu0 0.0
    %258 = vmatpush1.msra.mxu0 0.0
    %259 = vmatprep.subr.mxu0 0.0
    %260 = vmatpush1.msra.mxu0 0.0
    %261 = vmatprep.mubr.f32.mxu0 0.0
    %262 = vmatmul.mubr.f32.gmra.mrb[0].mxu0 %v171
    %v263 = vpop.f32.mrb[0].mxu0
    %v264 = vadd.f32 %v195, %v263
    %v265 = vpop.f32.mrb[0].mxu0
    %266 = vmatprep.mubr.f32.mxu0 0.0
    %267 = vmatmul.mubr.f32.gmra.mrb[0].mxu0 %v172
    %v268 = vpop.f32.mrb[0].mxu0
    %v269 = vadd.f32 %v195, %v268
    %v270 = vpop.f32.mrb[0].mxu0
    %271 = vdwg.mxu0
    %vm272 = vcmp.gt.f32.partialorder %v264, 0.0
    %vm273 = vcmp.gt.f32.partialorder %v269, 0.0
    %v274 = vmin.f32 %v264, 0.0
    %v275 = vmin.f32 %v269, 0.0
    %v276 = vmul.f32 %v274, 1.442695
    %v277 = vpow.pop %v276
    %v278 = vmul.f32 %v275, 1.442695
    %v279 = vpow.pop %v278
    %v280 = vsub.f32 %v277, 1.0
    %v281 = vsub.f32 %v279, 1.0
    %v282 = vmul.f32 %v280, 0.1
    %v283 = vmul.f32 %v281, 0.1
    %v284 = vsel %vm272, %v264, %v282
    %v285 = vsel %vm273, %v269, %v283
    %s286 = scalar_lea.vmem [#allocation7], 128
    %v287 = vld [vmem:[%s286] sm:$0xff]
    %v288 = vld [vmem:[%s286 + $0x8] sm:$0xff]
    %v289 = vld [vmem:[%s286 + $0x10] sm:$0xff]
    %v290 = vld [vmem:[%s286 + $0x18] sm:$0xff]
    %v291 = vld [vmem:[%s286 + $0x20] sm:$0xff]
    %v292 = vld [vmem:[%s286 + $0x28] sm:$0xff]
    %v293 = vld [vmem:[%s286 + $0x30] sm:$0xff]
    %v294 = vld [vmem:[%s286 + $0x38] sm:$0xff]
    %v295 = vld [vmem:[%s286 + $0x40] sm:$0xff]
    %v296 = vld [vmem:[%s286 + $0x48] sm:$0xff]
    %v297 = vld [vmem:[%s286 + $0x50] sm:$0xff]
    %v298 = vld [vmem:[%s286 + $0x58] sm:$0xff]
    %v299 = vld [vmem:[%s286 + $0x60] sm:$0xff]
    %v300 = vld [vmem:[%s286 + $0x68] sm:$0xff]
    %v301 = vld [vmem:[%s286 + $0x70] sm:$0xff]
    %v302 = vld [vmem:[%s286 + $0x78] sm:$0xff]
    %s303 = scalar_lea.vmem %s3, 2
    %v304 = vld [vmem:[%s303] sm:$0x1]
    %v306 = vlaneseq
    %v307 = vshrl.u32 %v306, 7
    %v308 = vsub.s32 0, %v307
    %v309 = vrot.slane %v304, %v308
    %311 = vmatprep.subr.mxu0 0.0
    %312 = vmatpush1.msra.mxu0 %v287
    %313 = vmatprep.subr.mxu0 0.0
    %314 = vmatpush1.msra.mxu0 %v288
    %315 = vmatprep.subr.mxu0 0.0
    %316 = vmatpush1.msra.mxu0 %v289
    %317 = vmatprep.subr.mxu0 0.0
    %318 = vmatpush1.msra.mxu0 %v290
    %319 = vmatprep.subr.mxu0 0.0
    %320 = vmatpush1.msra.mxu0 %v291
    %321 = vmatprep.subr.mxu0 0.0
    %322 = vmatpush1.msra.mxu0 %v292
    %323 = vmatprep.subr.mxu0 0.0
    %324 = vmatpush1.msra.mxu0 %v293
    %325 = vmatprep.subr.mxu0 0.0
    %326 = vmatpush1.msra.mxu0 %v294
    %327 = vmatprep.subr.mxu0 0.0
    %328 = vmatpush1.msra.mxu0 %v295
    %329 = vmatprep.subr.mxu0 0.0
    %330 = vmatpush1.msra.mxu0 %v296
    %331 = vmatprep.subr.mxu0 0.0
    %332 = vmatpush1.msra.mxu0 %v297
    %333 = vmatprep.subr.mxu0 0.0
    %334 = vmatpush1.msra.mxu0 %v298
    %335 = vmatprep.subr.mxu0 0.0
    %336 = vmatpush1.msra.mxu0 %v299
    %337 = vmatprep.subr.mxu0 0.0
    %338 = vmatpush1.msra.mxu0 %v300
    %339 = vmatprep.subr.mxu0 0.0
    %340 = vmatpush1.msra.mxu0 %v301
    %341 = vmatprep.subr.mxu0 0.0
    %342 = vmatpush1.msra.mxu0 %v302
    %343 = vmatprep.subr.mxu0 0.0
    %344 = vmatpush1.msra.mxu0 0.0
    %345 = vmatprep.subr.mxu0 0.0
    %346 = vmatpush1.msra.mxu0 0.0
    %347 = vmatprep.subr.mxu0 0.0
    %348 = vmatpush1.msra.mxu0 0.0
    %349 = vmatprep.subr.mxu0 0.0
    %350 = vmatpush1.msra.mxu0 0.0
    %351 = vmatprep.subr.mxu0 0.0
    %352 = vmatpush1.msra.mxu0 0.0
    %353 = vmatprep.subr.mxu0 0.0
    %354 = vmatpush1.msra.mxu0 0.0
    %355 = vmatprep.subr.mxu0 0.0
    %356 = vmatpush1.msra.mxu0 0.0
    %357 = vmatprep.subr.mxu0 0.0
    %358 = vmatpush1.msra.mxu0 0.0
    %359 = vmatprep.subr.mxu0 0.0
    %360 = vmatpush1.msra.mxu0 0.0
    %361 = vmatprep.subr.mxu0 0.0
    %362 = vmatpush1.msra.mxu0 0.0
    %363 = vmatprep.subr.mxu0 0.0
    %364 = vmatpush1.msra.mxu0 0.0
    %365 = vmatprep.subr.mxu0 0.0
    %366 = vmatpush1.msra.mxu0 0.0
    %367 = vmatprep.subr.mxu0 0.0
    %368 = vmatpush1.msra.mxu0 0.0
    %369 = vmatprep.subr.mxu0 0.0
    %370 = vmatpush1.msra.mxu0 0.0
    %371 = vmatprep.subr.mxu0 0.0
    %372 = vmatpush1.msra.mxu0 0.0
    %373 = vmatprep.subr.mxu0 0.0
    %374 = vmatpush1.msra.mxu0 0.0
    %375 = vmatprep.mubr.f32.mxu0 0.0
    %376 = vmatmul.mubr.f32.gmra.mrb[0].mxu0 %v284
    %v377 = vpop.f32.mrb[0].mxu0
    %v378 = vadd.f32 %v309, %v377
    %v379 = vpop.f32.mrb[0].mxu0
    %380 = vmatprep.mubr.f32.mxu0 0.0
    %381 = vmatmul.mubr.f32.gmra.mrb[0].mxu0 %v285
    %v382 = vpop.f32.mrb[0].mxu0
    %v383 = vadd.f32 %v309, %v382
    %v384 = vpop.f32.mrb[0].mxu0
    %385 = vdwg.mxu0
    %vm386 = vcmp.gt.f32.partialorder %v378, 0.0
    %vm387 = vcmp.gt.f32.partialorder %v383, 0.0
    %v388 = vmin.f32 %v378, 0.0
    %v389 = vmin.f32 %v383, 0.0
    %v390 = vmul.f32 %v388, 1.442695
    %v391 = vpow.pop %v390
    %v392 = vmul.f32 %v389, 1.442695
    %v393 = vpow.pop %v392
    %v394 = vsub.f32 %v391, 1.0
    %v395 = vsub.f32 %v393, 1.0
    %v396 = vmul.f32 %v394, 0.1
    %v397 = vmul.f32 %v395, 0.1
    %v398 = vsel %vm386, %v378, %v396
    %v399 = vsel %vm387, %v383, %v397
    %400 = vst [vmem:[#allocation8] sm:$0xff] %v398
    %401 = vst [vmem:[#allocation8 + $0x8] sm:$0xff] %v399
    // Predicated region
    $region30: #{tpu_custom_call.1} parent=1 // pred_check
      _
    $region31: #{tpu_custom_call.1} parent=1 // pred_check_branch
      %403 = sbr.rel (0) target = $region33
    $region32: #{tpu_custom_call.1} parent=1 // pred_region
      %s405 = ssub.s32 256, 256
      %406 = vsyncadd [#allocation4], %s405
      %s407 = sshll.u32 [#allocation8], 4
      %s408 = int_to_ptr.vmem [resolvable:$true] %s407
      %413 = dma.vmem_to_hbm [thread:$0]  %s408, 256, %s4, [#allocation4], 128, 128, 8
    $region33: #{tpu_custom_call.1} parent=1 // pred_fallthru
      _
    // Predicated region
    $region34: #{tpu_custom_call.1} parent=1 // pred_check
      _
    $region35: #{tpu_custom_call.1} parent=1 // pred_check_branch
      %415 = sbr.rel (0) target = $region37
    $region36: #{tpu_custom_call.1} parent=1 // pred_region
      %416 = dma.done [#allocation4], 256
    $region37: #{tpu_custom_call.1} parent=1 // pred_fallthru
      _
    %417 = vsyncpa [#allocation3], 1
    %418 = vsyncpa [#allocation6], 1
    %419 = vsyncpa [#allocation4], 1

</llo_original>
